<compile_context>
chip_gen: v7x
topology: tpu7x:2x2x1
jax: 0.10.0
libtpu: 0.0.40
codegen_flags: <defaults>
</compile_context>

<pallas_src>
import jax
import jax.numpy as jnp
from jax.experimental import pallas as pl
from jax.experimental.pallas import tpu as pltpu


def _round_up(x, m):
    return ((x + m - 1) // m) * m


def _log_sigmoid(x):
    # numerically stable logsigmoid(x) = min(x, 0) - log1p(exp(-|x|))
    return jnp.minimum(x, 0.0) - jnp.log1p(jnp.exp(-jnp.abs(x)))


def _skipgram_loss_kernel(eu_ref, ev_ref, ns_ref, spos_ref, sneg_ref,
                          out_ref, acc_ref):
    """One batch tile: accumulate sum_b [logsigmoid(u.v) + logsigmoid(-u.n)].

    eu/ev/ns blocks are (rows, lane_w) with r = lane_w // D batch rows folded
    per vreg row (r == 1 when D >= 128).  spos/sneg are constant (lane_w, 2r)
    segment-selection matrices, so
        scores = (eu*ev) @ spos + (eu*ns) @ sneg
    holds [pos_0..pos_{r-1}, -neg_0..-neg_{r-1}] per folded row.
    """
    i = pl.program_id(1)  # reduction step within this partial ("arbitrary")

    @pl.when(i == 0)
    def _():
        acc_ref[...] = jnp.zeros_like(acc_ref)

    eu = eu_ref[...].astype(jnp.float32)
    ev = ev_ref[...].astype(jnp.float32)
    ns = ns_ref[...].astype(jnp.float32)

    scores = (
        jnp.dot(eu * ev, spos_ref[...], preferred_element_type=jnp.float32)
        + jnp.dot(eu * ns, sneg_ref[...], preferred_element_type=jnp.float32)
    )
    # Single EUP pass over the packed score block; vectorized accumulation.
    acc_ref[...] += _log_sigmoid(scores)

    @pl.when(i == pl.num_programs(1) - 1)
    def _():
        out_ref[...] = jnp.broadcast_to(jnp.sum(acc_ref[...]), out_ref.shape)


def _choose_block_rows(lane_w, stream_itemsize, vmem_limit_bytes, max_block_rows):
    # Budget: 3 double-buffered input windows (stream dtype) + ~4x f32 working
    # copies (upcasts + products) + the f32 accumulator row, with ~12 MiB of
    # headroom under the scoped limit for the output window and Mosaic
    # internal scratch.  Pinned to v7x limits so one path is safe everywhere.
    budget = max(4 * 1024 * 1024, vmem_limit_bytes - 12 * 1024 * 1024)
    lane_padded = _round_up(lane_w, 128)
    per_row = lane_padded * (3 * 2 * stream_itemsize + 4 * 4) + 512
    rows = int(budget // per_row)
    rows = (rows // 8) * 8
    return max(8, min(max_block_rows, rows))


def skipgram_forward(u_emb_table, v_emb_table, u_pos, v_pos, v_neg, batch_size,
                     *, stream_dtype=None, num_partials=2,
                     vmem_limit_bytes=32 * 1024 * 1024, max_block_rows=4096):
    """Mirror of skipgram.forward. Returns the scalar loss (float32)."""
    # TODO(synk): the nn.Embedding gathers + negative-sum stay in XLA; fusing
    # them in-kernel (scalar-prefetched indices + per-row make_async_copy
    # gathers from tables kept in memory_space=pl.ANY) only pays for D >= ~128.
    embed_u = jnp.take(u_emb_table, u_pos, axis=0)                   # (B, D)
    embed_v = jnp.take(v_emb_table, v_pos, axis=0)                   # (B, D)
    neg_sum = jnp.sum(jnp.take(v_emb_table, v_neg, axis=0), axis=1)  # (B, D)

    if stream_dtype is not None:  # bf16 streaming halves HBM bytes (mem-bound)
        embed_u = embed_u.astype(stream_dtype)
        embed_v = embed_v.astype(stream_dtype)
        neg_sum = neg_sum.astype(stream_dtype)

    B, D = embed_u.shape
    itemsize = jnp.dtype(embed_u.dtype).itemsize

    # Fold r batch rows per 128-lane vreg row when D < 128 and divides 128
    # (zero-copy row-major reshape) so every vreg / DMA byte is useful.
    fold = (D < 128) and (128 % D == 0)
    r = 128 // D if fold else 1
    lane_w = r * D
    n_rows = pl.cdiv(B, r)                    # folded rows holding real data

    rows = _choose_block_rows(lane_w, itemsize, vmem_limit_bytes, max_block_rows)
    rows = max(8, min(rows, _round_up(n_rows, 8)))

    tiles_per_partial = pl.cdiv(pl.cdiv(n_rows, rows), num_partials)
    rows_pad = num_partials * tiles_per_partial * rows
    b_pad = rows_pad * r
    n_pad = b_pad - B                          # zero rows added for tiling

    def _prep(x):
        x = jnp.pad(x, ((0, b_pad - B), (0, 0)))
        return x.reshape(rows_pad, lane_w)     # zero-copy fold (row-major)

    eu, ev, ns = (_prep(x) for x in (embed_u, embed_v, neg_sum))

    # Segment-selection matrices:
    #   scores[:, c]     =  sum_d (u*v)[:, c*D + d]   (positive score, row c)
    #   scores[:, r + c] = -sum_d (u*n)[:, c*D + d]   (negated negative score)
    seg = (jnp.arange(lane_w, dtype=jnp.int32) // D)[:, None]       # (lane_w, 1)
    col = jnp.arange(2 * r, dtype=jnp.int32)[None, :]               # (1, 2r)
    s_pos = (col == seg).astype(jnp.float32)
    s_neg = -(((col - r) == seg).astype(jnp.float32))

    stream_spec = pl.BlockSpec(
        (rows, lane_w), lambda c, i: (c * tiles_per_partial + i, 0))
    sel_spec = pl.BlockSpec((lane_w, 2 * r), lambda c, i: (0, 0))

    partials = pl.pallas_call(
        _skipgram_loss_kernel,
        out_shape=jax.ShapeDtypeStruct((num_partials, 8, 128), jnp.float32),
        grid_spec=pltpu.PrefetchScalarGridSpec(
            num_scalar_prefetch=0,
            grid=(num_partials, tiles_per_partial),
            in_specs=[stream_spec, stream_spec, stream_spec, sel_spec, sel_spec],
            out_specs=pl.BlockSpec((1, 8, 128), lambda c, i: (c, 0, 0)),
            scratch_shapes=[pltpu.VMEM((rows, 2 * r), jnp.float32)],
        ),
        compiler_params=pltpu.CompilerParams(
            dimension_semantics=("parallel", "arbitrary"),
            vmem_limit_bytes=vmem_limit_bytes,
        ),
    )(eu, ev, ns, s_pos, s_neg)

    total = jnp.sum(partials[:, 0, 0])
    # Each zero padding row contributed exactly 2*logsigmoid(0) = -2*log1p(1).
    total = total + n_pad * 2.0 * jnp.log1p(jnp.float32(1.0))
    return -total / batch_size


def _reference_forward(u_emb_table, v_emb_table, u_pos, v_pos, v_neg, batch_size):
    embed_u = u_emb_table[u_pos]
    embed_v = v_emb_table[v_pos]
    score = jnp.sum(embed_u * embed_v, axis=1)
    log_target = jax.nn.log_sigmoid(score)
    neg_embed_v = v_emb_table[v_neg]
    neg_score = jnp.sum(jnp.einsum("bnd,bd->bn", neg_embed_v, embed_u), axis=1)
    sum_log_sampled = jax.nn.log_sigmoid(-neg_score)
    loss = log_target + sum_log_sampled
    return -jnp.sum(loss) / batch_size


def _run_case(vocab_size, embedding_dim, batch_size, num_neg, stream_dtype, tol):
    key = jax.random.PRNGKey(0)
    k_u, k_v, k_up, k_vp, k_vn = jax.random.split(key, 5)

    initrange = 0.5 / embedding_dim
    u_emb_table = jax.random.uniform(
        k_u, (vocab_size, embedding_dim), jnp.float32, -initrange, initrange)
    # NOTE: init_emb() zeroes v_embeddings (uniform_(-0, 0)); small random
    # values are used here so the forward pass is non-trivial.
    v_emb_table = jax.random.uniform(
        k_v, (vocab_size, embedding_dim), jnp.float32, -initrange, initrange)

    u_pos = jax.random.randint(k_up, (batch_size,), 0, vocab_size, jnp.int32)
    v_pos = jax.random.randint(k_vp, (batch_size,), 0, vocab_size, jnp.int32)
    v_neg = jax.random.randint(
        k_vn, (batch_size, num_neg), 0, vocab_size, jnp.int32)

    loss = skipgram_forward(u_emb_table, v_emb_table, u_pos, v_pos, v_neg,
                            batch_size, stream_dtype=stream_dtype)
    loss = jax.block_until_ready(loss)
    ref = _reference_forward(u_emb_table, v_emb_table, u_pos, v_pos, v_neg,
                             batch_size)
    assert jnp.allclose(loss, ref, atol=tol, rtol=tol), (
        embedding_dim, stream_dtype, loss, ref)


if __name__ == "__main__":
    # D < 128: folded lane-dense path (r = 4 batch rows per vreg row).
    _run_case(64, 32, 8, 5, None, 1e-4)
    # D >= 128: plain path (r = 1), lane-dense blocks.
    _run_case(64, 256, 8, 5, None, 1e-4)
    # bf16 streaming (halves HBM bytes); compute stays f32 in-kernel.
    _run_case(64, 32, 8, 5, jnp.bfloat16, 5e-3)
    print("KERNEL_OK")
</pallas_src>

<mosaic_0001>
module attributes {stable_mosaic.version = 11 : i64} {
  func.func @_skipgram_loss_kernel(%arg0: i32, %arg1: i32, %arg2: memref<8x128xf32, #tpu.memory_space<vmem>>, %arg3: memref<8x128xf32, #tpu.memory_space<vmem>>, %arg4: memref<8x128xf32, #tpu.memory_space<vmem>>, %arg5: memref<128x8xf32, #tpu.memory_space<vmem>>, %arg6: memref<128x8xf32, #tpu.memory_space<vmem>>, %arg7: memref<1x8x128xf32, #tpu.memory_space<vmem>>, %arg8: memref<8x8xf32, #tpu.memory_space<vmem>>) attributes {dimension_semantics = [#tpu.dimension_semantics<parallel>, #tpu.dimension_semantics<arbitrary>], iteration_bounds = array<i64: 2, 1>, scalar_prefetch = 0 : i64, scratch_operands = 1 : i64, tpu.core_type = #tpu.core_type<tc>, window_params = [{transform_indices = @transform_0, window_bounds = array<i64: 8, 128>}, {transform_indices = @transform_1, window_bounds = array<i64: 8, 128>}, {transform_indices = @transform_2, window_bounds = array<i64: 8, 128>}, {pipeline_mode = #tpu.pipeline_mode<synchronous>, transform_indices = @transform_3, window_bounds = array<i64: 128, 8>}, {pipeline_mode = #tpu.pipeline_mode<synchronous>, transform_indices = @transform_4, window_bounds = array<i64: 128, 8>}, {transform_indices = @transform_5, window_bounds = array<i64: 1, 8, 128>}]} {
    %c0_i32 = arith.constant 0 : i32
    %0 = arith.cmpi eq, %arg1, %c0_i32 : i32
    %1 = arith.extui %0 : i1 to i32
    %c0_i32_0 = arith.constant 0 : i32
    %2 = arith.cmpi ne, %1, %c0_i32_0 : i32
    scf.if %2 {
      %cst_19 = arith.constant 0.000000e+00 : f32
      %27 = vector.broadcast %cst_19 : f32 to vector<8x8xf32>
      %c0_20 = arith.constant 0 : index
      %c0_21 = arith.constant 0 : index
      %28 = vector.load %arg8[%c0_20, %c0_21] : memref<8x8xf32, #tpu.memory_space<vmem>>, vector<8x8xf32>
      tpu.vector_store %arg8[%c0_20, %c0_21], %27 {strides = array<i32>} : memref<8x8xf32, #tpu.memory_space<vmem>>, vector<8x8xf32>,
    } else {
    }
    %c0 = arith.constant 0 : index
    %c0_1 = arith.constant 0 : index
    %3 = vector.load %arg2[%c0, %c0_1] : memref<8x128xf32, #tpu.memory_space<vmem>>, vector<8x128xf32>
    %c0_2 = arith.constant 0 : index
    %c0_3 = arith.constant 0 : index
    %4 = vector.load %arg3[%c0_2, %c0_3] : memref<8x128xf32, #tpu.memory_space<vmem>>, vector<8x128xf32>
    %c0_4 = arith.constant 0 : index
    %c0_5 = arith.constant 0 : index
    %5 = vector.load %arg4[%c0_4, %c0_5] : memref<8x128xf32, #tpu.memory_space<vmem>>, vector<8x128xf32>
    %6 = arith.mulf %3, %4 : vector<8x128xf32>
    %c0_6 = arith.constant 0 : index
    %c0_7 = arith.constant 0 : index
    %7 = vector.load %arg5[%c0_6, %c0_7] : memref<128x8xf32, #tpu.memory_space<vmem>>, vector<128x8xf32>
    %cst = arith.constant dense<0.000000e+00> : vector<8x8xf32>
    %8 = tpu.matmul %6, %7, %cst {dimension_numbers = #tpu.dot_dimension_numbers<[1], [0], [0], [1], [0, 0, 1, 1], [], []>} : vector<8x128xf32>, vector<128x8xf32>, vector<8x8xf32> -> vector<8x8xf32>
    %9 = arith.mulf %3, %5 : vector<8x128xf32>
    %c0_8 = arith.constant 0 : index
    %c0_9 = arith.constant 0 : index
    %10 = vector.load %arg6[%c0_8, %c0_9] : memref<128x8xf32, #tpu.memory_space<vmem>>, vector<128x8xf32>
    %cst_10 = arith.constant dense<0.000000e+00> : vector<8x8xf32>
    %11 = tpu.matmul %9, %10, %cst_10 {dimension_numbers = #tpu.dot_dimension_numbers<[1], [0], [0], [1], [0, 0, 1, 1], [], []>} : vector<8x128xf32>, vector<128x8xf32>, vector<8x8xf32> -> vector<8x8xf32>
    %12 = arith.addf %8, %11 : vector<8x8xf32>
    %c0_11 = arith.constant 0 : index
    %c0_12 = arith.constant 0 : index
    %13 = vector.load %arg8[%c0_11, %c0_12] : memref<8x8xf32, #tpu.memory_space<vmem>>, vector<8x8xf32>
    %cst_13 = arith.constant 0.000000e+00 : f32
    %14 = vector.broadcast %cst_13 : f32 to vector<8x8xf32>
    %15 = arith.minimumf %12, %14 : vector<8x8xf32>
    %16 = math.absf %12 : vector<8x8xf32>
    %cst_14 = arith.constant 0.000000e+00 : f32
    %17 = vector.broadcast %cst_14 : f32 to vector<8x8xf32>
    %18 = arith.subf %17, %16 : vector<8x8xf32>
    %19 = math.exp %18 : vector<8x8xf32>
    %20 = math.log1p %19 : vector<8x8xf32>
    %21 = arith.subf %15, %20 : vector<8x8xf32>
    %22 = arith.addf %13, %21 : vector<8x8xf32>
    %c0_15 = arith.constant 0 : index
    %c0_16 = arith.constant 0 : index
    %23 = vector.load %arg8[%c0_15, %c0_16] : memref<8x8xf32, #tpu.memory_space<vmem>>, vector<8x8xf32>
    tpu.vector_store %arg8[%c0_15, %c0_16], %22 {strides = array<i32>} : memref<8x8xf32, #tpu.memory_space<vmem>>, vector<8x8xf32>,
    %c0_i32_17 = arith.constant 0 : i32
    %24 = arith.cmpi eq, %arg1, %c0_i32_17 : i32
    %25 = arith.extui %24 : i1 to i32
    %c0_i32_18 = arith.constant 0 : i32
    %26 = arith.cmpi ne, %25, %c0_i32_18 : i32
    scf.if %26 {
      %c0_19 = arith.constant 0 : index
      %c0_20 = arith.constant 0 : index
      %27 = vector.load %arg8[%c0_19, %c0_20] : memref<8x8xf32, #tpu.memory_space<vmem>>, vector<8x8xf32>
      %28 = vector.shape_cast %27 : vector<8x8xf32> to vector<1x8x8xf32>
      %cst_21 = arith.constant dense<0.000000e+00> : vector<1xf32>
      %29 = vector.multi_reduction <add>, %28, %cst_21 [1, 2] : vector<1x8x8xf32> to vector<1xf32>
      %30 = vector.shape_cast %29 : vector<1xf32> to vector<1x1x1xf32>
      %31 = vector.extract %30[0, 0, 0] : f32 from vector<1x1x1xf32>
      %32 = vector.broadcast %31 : f32 to vector<1x8x128xf32>
      %c0_22 = arith.constant 0 : index
      %c0_23 = arith.constant 0 : index
      %c0_24 = arith.constant 0 : index
      %33 = vector.load %arg7[%c0_22, %c0_23, %c0_24] : memref<1x8x128xf32, #tpu.memory_space<vmem>>, vector<1x8x128xf32>
      tpu.vector_store %arg7[%c0_22, %c0_23, %c0_24], %32 {strides = array<i32>} : memref<1x8x128xf32, #tpu.memory_space<vmem>>, vector<1x8x128xf32>,
    } else {
    }
    return
  }
  func.func @transform_0(%arg0: i32, %arg1: i32) -> (i32, i32) {
    %c1_i32 = arith.constant 1 : i32
    %0 = arith.muli %arg0, %c1_i32 : i32
    %1 = arith.addi %0, %arg1 : i32
    %c0_i32 = arith.constant 0 : i32
    %c0_i32_0 = arith.constant 0 : i32
    return %1, %c0_i32 : i32, i32
  }
  func.func @transform_1(%arg0: i32, %arg1: i32) -> (i32, i32) {
    %c1_i32 = arith.constant 1 : i32
    %0 = arith.muli %arg0, %c1_i32 : i32
    %1 = arith.addi %0, %arg1 : i32
    %c0_i32 = arith.constant 0 : i32
    %c0_i32_0 = arith.constant 0 : i32
    return %1, %c0_i32 : i32, i32
  }
  func.func @transform_2(%arg0: i32, %arg1: i32) -> (i32, i32) {
    %c1_i32 = arith.constant 1 : i32
    %0 = arith.muli %arg0, %c1_i32 : i32
    %1 = arith.addi %0, %arg1 : i32
    %c0_i32 = arith.constant 0 : i32
    %c0_i32_0 = arith.constant 0 : i32
    return %1, %c0_i32 : i32, i32
  }
  func.func @transform_3(%arg0: i32, %arg1: i32) -> (i32, i32) {
    %c0_i32 = arith.constant 0 : i32
    %c0_i32_0 = arith.constant 0 : i32
    %c0_i32_1 = arith.constant 0 : i32
    return %c0_i32, %c0_i32_0 : i32, i32
  }
  func.func @transform_4(%arg0: i32, %arg1: i32) -> (i32, i32) {
    %c0_i32 = arith.constant 0 : i32
    %c0_i32_0 = arith.constant 0 : i32
    %c0_i32_1 = arith.constant 0 : i32
    return %c0_i32, %c0_i32_0 : i32, i32
  }
  func.func @transform_5(%arg0: i32, %arg1: i32) -> (i32, i32, i32) {
    %c0_i32 = arith.constant 0 : i32
    %c0_i32_0 = arith.constant 0 : i32
    %c0_i32_1 = arith.constant 0 : i32
    return %arg0, %c0_i32, %c0_i32_0 : i32, i32, i32
  }
}

</mosaic_0001>

<llo_original>
// kernel: tpu_custom_call.1
$region0: #{tpu_custom_call.1}
  #allocation0 [shape = 'u32[]', space=smem, size = 0x4, offset = 0x4, fixed_abs, tag = 'smem constant byte address 0x4 - core index']
  #allocation1 [shape = 'u32[144,128]{1,0:T(1,128)}', space=vmem, size = 0x12000, scoped, tag = 'internal scratch']
  #allocation2 [shape = 'f32[8,8]{1,0:T(8,128)}', space=vmem, size = 0x1000, scoped, tag = 'scratch operand']
  %s0 = inlined_call_operand.vmem [shape: f32[16,128], index: 0, kind: input, shape index: {}]
  %s1 = inlined_call_operand.vmem [shape: f32[16,128], index: 1, kind: input, shape index: {}]
  %s2 = inlined_call_operand.vmem [shape: f32[16,128], index: 2, kind: input, shape index: {}]
  %s3 = inlined_call_operand.vmem [shape: f32[128,8], index: 3, kind: input, shape index: {}]
  %s4 = inlined_call_operand.vmem [shape: f32[128,8], index: 4, kind: input, shape index: {}]
  %s5 = inlined_call_operand.hbm [shape: f32[2,8,128], index: 5, kind: output, shape index: {}]
  %s6 = sld [smem:[#allocation0]]
  $region61: #{tpu_custom_call.1} parent=0
    _
  %s8 = ssub.s32 1, %s6
  %s9 = scalar_select 0, %s8, %s6
  $region1: #{tpu_custom_call.1} parent=0
    #allocation3 [shape = 'u8[8192]{0}', space=vmem, size = 0x2000, scoped, tag = 'output window, operand 0']
    #allocation4 [shape = 's32[2]{0}', space=sflag, size = 0x8, scoped, tag = 'scoped memory for tpu_custom_call.1']
    %10 = vsyncpa [#allocation4], 0
    %s11 = scalar_lea.sflag [#allocation4], 1
    %12 = vsyncpa %s11, 0
    loop: start=0, step=1, limit=4
    $region2: #{tpu_custom_call.1} parent=1 // loop_pre_header
      _
    $region3: #{tpu_custom_call.1} parent=1 // loop_header
      %s14 = sphi 0, %s18
      %p15 = scmp.ge.s32.totalorder %s14, 4
      %s21 = sphi 0, %s33
      %s22 = sphi 0, %s29
      %s23 = sphi 0, %s21
      %s24 = sphi 0, %s22
      %s25 = sphi 0, %s23
      %s26 = sphi 0, %s24
      %s38 = sphi 0, %s40
      %s41 = sphi 0, %s38
      %s42 = sphi 0, %s41
      %s58 = sphi 0, %s42
      %s66 = sphi 0, %s68
      %s69 = sphi 0, %s66
      %s70 = sphi 0, %s69
      %s86 = sphi 0, %s70
      %s94 = sphi 0, %s96
      %s97 = sphi 0, %s94
      %s98 = sphi 0, %s97
      %s114 = sphi 0, %s98
      %s118 = sphi 0, %s118
      %s120 = sphi 0, %s118
      %s121 = sphi 0, %s120
      %s135 = sphi 0, %s121
      %s139 = sphi 0, %s139
      %s141 = sphi 0, %s139
      %s142 = sphi 0, %s141
      %s156 = sphi 0, %s142
      %s162 = sphi 0, %s164
      %s165 = sphi 0, %s162
      %s166 = sphi 0, %s165
      %s182 = sphi 0, %s166
    $region4: #{tpu_custom_call.1} parent=1 // loop_header_branch
      %17 = sbr.rel (%p15) target = $region8
    $region5: #{tpu_custom_call.1} parent=1 // loop_body
      %s19 = ssub.s32 %s14, 1
      %s20 = ssub.s32 %s14, 2
      %s27 = sadd.s32 1, %s22
      %p28 = scmp.ge.s32.totalorder %s27, 1
      %s29 = scalar_select %p28, 0, %s27
      %s30 = sadd.s32 1, %s21
      %s31 = scalar_select %p28, %s30, %s21
      %p32 = scmp.ge.s32.totalorder %s31, 2
      %s33 = scalar_select %p32, 0, %s31
      %s34 = sadd.s32 %s21, %s22
      %s35 = sadd.s32 %s33, %s29
      %s36 = ssub.s32 %s34, %s35
      %p37 = scmp.eq.s32.totalorder %s36, 0
      %s39 = sadd.s32 %s38, 1
      %s40 = scalar_select %p37, %s38, %s39
      %p43 = pneg %p37
      %p44 = scmp.eq.s32.totalorder %s14, 1
      %p45 = por %p43, %p44
      %p46 = scmp.ne.s32.totalorder %s38, %s41
      %p47 = scmp.eq.s32.totalorder %s14, 0
      %p48 = por %p46, %p47
      %p49 = scmp.ne.s32.totalorder %s38, %s41
      %p50 = scmp.eq.s32.totalorder %s19, 1
      %p51 = por %p49, %p50
      %p52 = scmp.ne.s32.totalorder %s41, %s42
      %p53 = scmp.eq.s32.totalorder %s19, 0
      %p54 = por %p52, %p53
      %p55 = scmp.ne.s32.totalorder %s41, %s42
      %p56 = scmp.eq.s32.totalorder %s20, 1
      %p57 = por %p55, %p56
      %p59 = scmp.ne.s32.totalorder %s42, %s58
      %p60 = scmp.eq.s32.totalorder %s20, 0
      %p61 = por %p59, %p60
      %s62 = sadd.s32 %s21, %s22
      %s63 = sadd.s32 %s33, %s29
      %s64 = ssub.s32 %s62, %s63
      %p65 = scmp.eq.s32.totalorder %s64, 0
      %s67 = sadd.s32 %s66, 1
      %s68 = scalar_select %p65, %s66, %s67
      %p71 = pneg %p65
      %p72 = scmp.eq.s32.totalorder %s14, 1
      %p73 = por %p71, %p72
      %p74 = scmp.ne.s32.totalorder %s66, %s69
      %p75 = scmp.eq.s32.totalorder %s14, 0
      %p76 = por %p74, %p75
      %p77 = scmp.ne.s32.totalorder %s66, %s69
      %p78 = scmp.eq.s32.totalorder %s19, 1
      %p79 = por %p77, %p78
      %p80 = scmp.ne.s32.totalorder %s69, %s70
      %p81 = scmp.eq.s32.totalorder %s19, 0
      %p82 = por %p80, %p81
      %p83 = scmp.ne.s32.totalorder %s69, %s70
      %p84 = scmp.eq.s32.totalorder %s20, 1
      %p85 = por %p83, %p84
      %p87 = scmp.ne.s32.totalorder %s70, %s86
      %p88 = scmp.eq.s32.totalorder %s20, 0
      %p89 = por %p87, %p88
      %s90 = sadd.s32 %s21, %s22
      %s91 = sadd.s32 %s33, %s29
      %s92 = ssub.s32 %s90, %s91
      %p93 = scmp.eq.s32.totalorder %s92, 0
      %s95 = sadd.s32 %s94, 1
      %s96 = scalar_select %p93, %s94, %s95
      %p99 = pneg %p93
      %p100 = scmp.eq.s32.totalorder %s14, 1
      %p101 = por %p99, %p100
      %p102 = scmp.ne.s32.totalorder %s94, %s97
      %p103 = scmp.eq.s32.totalorder %s14, 0
      %p104 = por %p102, %p103
      %p105 = scmp.ne.s32.totalorder %s94, %s97
      %p106 = scmp.eq.s32.totalorder %s19, 1
      %p107 = por %p105, %p106
      %p108 = scmp.ne.s32.totalorder %s97, %s98
      %p109 = scmp.eq.s32.totalorder %s19, 0
      %p110 = por %p108, %p109
      %p111 = scmp.ne.s32.totalorder %s97, %s98
      %p112 = scmp.eq.s32.totalorder %s20, 1
      %p113 = por %p111, %p112
      %p115 = scmp.ne.s32.totalorder %s98, %s114
      %p116 = scmp.eq.s32.totalorder %s20, 0
      %p117 = por %p115, %p116
      %s119 = sadd.s32 %s118, 1
      %p122 = scmp.eq.s32.totalorder %s14, 1
      %p123 = scmp.ne.s32.totalorder %s118, %s120
      %p124 = scmp.eq.s32.totalorder %s14, 0
      %p125 = por %p123, %p124
      %p126 = scmp.ne.s32.totalorder %s118, %s120
      %p127 = scmp.eq.s32.totalorder %s19, 1
      %p128 = por %p126, %p127
      %p129 = scmp.ne.s32.totalorder %s120, %s121
      %p130 = scmp.eq.s32.totalorder %s19, 0
      %p131 = por %p129, %p130
      %p132 = scmp.ne.s32.totalorder %s120, %s121
      %p133 = scmp.eq.s32.totalorder %s20, 1
      %p134 = por %p132, %p133
      %p136 = scmp.ne.s32.totalorder %s121, %s135
      %p137 = scmp.eq.s32.totalorder %s20, 0
      %p138 = por %p136, %p137
      %s140 = sadd.s32 %s139, 1
      %p143 = scmp.eq.s32.totalorder %s14, 1
      %p144 = scmp.ne.s32.totalorder %s139, %s141
      %p145 = scmp.eq.s32.totalorder %s14, 0
      %p146 = por %p144, %p145
      %p147 = scmp.ne.s32.totalorder %s139, %s141
      %p148 = scmp.eq.s32.totalorder %s19, 1
      %p149 = por %p147, %p148
      %p150 = scmp.ne.s32.totalorder %s141, %s142
      %p151 = scmp.eq.s32.totalorder %s19, 0
      %p152 = por %p150, %p151
      %p153 = scmp.ne.s32.totalorder %s141, %s142
      %p154 = scmp.eq.s32.totalorder %s20, 1
      %p155 = por %p153, %p154
      %p157 = scmp.ne.s32.totalorder %s142, %s156
      %p158 = scmp.eq.s32.totalorder %s20, 0
      %p159 = por %p157, %p158
      %s160 = ssub.s32 %s21, %s33
      %p161 = scmp.eq.s32.totalorder %s160, 0
      %s163 = sadd.s32 %s162, 1
      %s164 = scalar_select %p161, %s162, %s163
      %p167 = pneg %p161
      %p168 = scmp.eq.s32.totalorder %s14, 1
      %p169 = por %p167, %p168
      %p170 = scmp.ne.s32.totalorder %s162, %s165
      %p171 = scmp.eq.s32.totalorder %s14, 0
      %p172 = por %p170, %p171
      %p173 = scmp.ne.s32.totalorder %s162, %s165
      %p174 = scmp.eq.s32.totalorder %s19, 1
      %p175 = por %p173, %p174
      %p176 = scmp.ne.s32.totalorder %s165, %s166
      %p177 = scmp.eq.s32.totalorder %s19, 0
      %p178 = por %p176, %p177
      %p179 = scmp.ne.s32.totalorder %s165, %s166
      %p180 = scmp.eq.s32.totalorder %s20, 1
      %p181 = por %p179, %p180
      %p183 = scmp.ne.s32.totalorder %s166, %s182
      %p184 = scmp.eq.s32.totalorder %s20, 0
      %p185 = por %p183, %p184
      %p186 = scmp.le.s32.totalorder 1, %s14
      %p187 = scmp.lt.s32.totalorder %s14, 3
      %p188 = pnand %p186, %p187
      %p189 = pneg %p188
      // Predicated region
      $region9: #{tpu_custom_call.1} parent=5 // pred_check
        _
      $region10: #{tpu_custom_call.1} parent=5 // pred_check_branch
        %191 = sbr.rel (%p188) target = $region12
      $region11: #{tpu_custom_call.1} parent=5 // pred_region
        %s192 = ssub.s32 %s14, 1
        // Predicated region
        $region13: #{tpu_custom_call.1} parent=11 // pred_check
          %p193 = pneg %p131
        $region14: #{tpu_custom_call.1} parent=11 // pred_check_branch
          %195 = sbr.rel (%p193) target = $region16
        $region15: #{tpu_custom_call.1} parent=11 // pred_region
          _
        $region16: #{tpu_custom_call.1} parent=11 // pred_fallthru
          _
        // Predicated region
        $region17: #{tpu_custom_call.1} parent=11 // pred_check
          %p196 = pneg %p152
        $region18: #{tpu_custom_call.1} parent=11 // pred_check_branch
          %198 = sbr.rel (%p196) target = $region20
        $region19: #{tpu_custom_call.1} parent=11 // pred_region
          _
        $region20: #{tpu_custom_call.1} parent=11 // pred_fallthru
          _
      $region12: #{tpu_custom_call.1} parent=5 // pred_fallthru
        _
      %p199 = scmp.lt.s32.totalorder %s14, 2
      // Predicated region
      $region21: #{tpu_custom_call.1} parent=5 // pred_check
        %p200 = pneg %p199
      $region22: #{tpu_custom_call.1} parent=5 // pred_check_branch
        %202 = sbr.rel (%p200) target = $region24
      $region23: #{tpu_custom_call.1} parent=5 // pred_region
        // Predicated region
        $region25: #{tpu_custom_call.1} parent=23 // pred_check
          %p203 = pneg %p48
        $region26: #{tpu_custom_call.1} parent=23 // pred_check_branch
          %205 = sbr.rel (%p203) target = $region28
        $region27: #{tpu_custom_call.1} parent=23 // pred_region
          %s206 = sadd.s32 %s21, %s22
          %p207 = scmp.lt.s32.totalorder %s206, 1
          %s208 = scalar_select %p207, %s206, 1
          %s209 = smul.addr %s208, 8
          %s210 = scalar_lea.vmem %s0, %s209
          %s211 = sadd.s32 %s21, %s22
        $region28: #{tpu_custom_call.1} parent=23 // pred_fallthru
          _
        // Predicated region
        $region29: #{tpu_custom_call.1} parent=23 // pred_check
          %p212 = pneg %p76
        $region30: #{tpu_custom_call.1} parent=23 // pred_check_branch
          %214 = sbr.rel (%p212) target = $region32
        $region31: #{tpu_custom_call.1} parent=23 // pred_region
          %s215 = sadd.s32 %s21, %s22
          %p216 = scmp.lt.s32.totalorder %s215, 1
          %s217 = scalar_select %p216, %s215, 1
          %s218 = smul.addr %s217, 8
          %s219 = scalar_lea.vmem %s1, %s218
          %s220 = sadd.s32 %s21, %s22
        $region32: #{tpu_custom_call.1} parent=23 // pred_fallthru
          _
        // Predicated region
        $region33: #{tpu_custom_call.1} parent=23 // pred_check
          %p221 = pneg %p104
        $region34: #{tpu_custom_call.1} parent=23 // pred_check_branch
          %223 = sbr.rel (%p221) target = $region36
        $region35: #{tpu_custom_call.1} parent=23 // pred_region
          %s224 = sadd.s32 %s21, %s22
          %p225 = scmp.lt.s32.totalorder %s224, 1
          %s226 = scalar_select %p225, %s224, 1
          %s227 = smul.addr %s226, 8
          %s228 = scalar_lea.vmem %s2, %s227
          %s229 = sadd.s32 %s21, %s22
        $region36: #{tpu_custom_call.1} parent=23 // pred_fallthru
          _
      $region24: #{tpu_custom_call.1} parent=5 // pred_fallthru
        _
      %p230 = scmp.le.s32.totalorder 1, %s14
      %p231 = scmp.lt.s32.totalorder %s14, 3
      %p232 = pnand %p230, %p231
      %p233 = pneg %p232
      // Predicated region
      $region37: #{tpu_custom_call.1} parent=5 // pred_check
        _
      $region38: #{tpu_custom_call.1} parent=5 // pred_check_branch
        %235 = sbr.rel (%p232) target = $region40
      $region39: #{tpu_custom_call.1} parent=5 // pred_region
        %s236 = ssub.s32 %s14, 1
        %s237 = sadd.s32 %s23, %s24
        %p238 = scmp.lt.s32.totalorder %s237, 1
        %s239 = scalar_select %p238, %s237, 1
        %s240 = smul.addr %s239, 8
        %s241 = scalar_lea.vmem %s0, %s240
        %p242 = pneg %p54
        %p243 = pneg %p51
        %s244 = sadd.s32 %s23, %s24
        %p245 = scmp.lt.s32.totalorder %s244, 1
        %s246 = scalar_select %p245, %s244, 1
        %s247 = smul.addr %s246, 8
        %s248 = scalar_lea.vmem %s1, %s247
        %p249 = pneg %p82
        %p250 = pneg %p79
        %s251 = sadd.s32 %s23, %s24
        %p252 = scmp.lt.s32.totalorder %s251, 1
        %s253 = scalar_select %p252, %s251, 1
        %s254 = smul.addr %s253, 8
        %s255 = scalar_lea.vmem %s2, %s254
        %p256 = pneg %p110
        %p257 = pneg %p107
        %p258 = pneg %p131
        %p259 = pneg %p128
        %p260 = pneg %p152
        %p261 = pneg %p149
        %p262 = pneg %p178
        %p263 = pneg %p175
        %s264 = sand.u32 %s165, 1
        %s265 = scalar_lea.sflag [#allocation4], %s264
        %s266 = sand.u32 %s165, 1
        %s267 = smul.addr %s266, 8
        %s268 = scalar_lea.vmem [#allocation3], %s267
        %s269 = sadd.s32 %s23, %s24
        %p270 = scmp.lt.s32.totalorder %s269, 1
        %s271 = scalar_select %p270, %s269, 1
        %s272 = smul.addr %s271, 8
        %s273 = scalar_lea.vmem %s0, %s272
        %s274 = sadd.s32 %s23, %s24
        %s275 = sadd.s32 %s23, %s24
        %p276 = scmp.lt.s32.totalorder %s275, 1
        %s277 = scalar_select %p276, %s275, 1
        %s278 = smul.addr %s277, 8
        %s279 = scalar_lea.vmem %s1, %s278
        %s280 = sadd.s32 %s23, %s24
        %s281 = sadd.s32 %s23, %s24
        %p282 = scmp.lt.s32.totalorder %s281, 1
        %s283 = scalar_select %p282, %s281, 1
        %s284 = smul.addr %s283, 8
        %s285 = scalar_lea.vmem %s2, %s284
        %s286 = sadd.s32 %s23, %s24
        %p287 = scmp.eq.s32.totalorder %s24, 0
        // Predicated region
        $region41: #{tpu_custom_call.1} parent=39 // pred_check
          %p288 = pneg %p287
        $region42: #{tpu_custom_call.1} parent=39 // pred_check_branch
          %290 = sbr.rel (%p288) target = $region44
        $region43: #{tpu_custom_call.1} parent=39 // pred_region
          %vm291 = vcmask 64512
          %292 = vst.msk [vmem:[#allocation2] sm:$0xff] %vm291, 0.0
        $region44: #{tpu_custom_call.1} parent=39 // pred_fallthru
          _
        %v293 = vld [vmem:[%s273] sm:$0xff]
        %v294 = vld [vmem:[%s279] sm:$0xff]
        %v295 = vld [vmem:[%s285] sm:$0xff]
        %v296 = vmul.f32 %v293, %v294
        %v297 = vld [vmem:[%s3] sm:$0xff]
        %v298 = vld [vmem:[%s3 + $0x8] sm:$0xff]
        %v299 = vld [vmem:[%s3 + $0x10] sm:$0xff]
        %v300 = vld [vmem:[%s3 + $0x18] sm:$0xff]
        %v301 = vld [vmem:[%s3 + $0x20] sm:$0xff]
        %v302 = vld [vmem:[%s3 + $0x28] sm:$0xff]
        %v303 = vld [vmem:[%s3 + $0x30] sm:$0xff]
        %v304 = vld [vmem:[%s3 + $0x38] sm:$0xff]
        %v305 = vld [vmem:[%s3 + $0x40] sm:$0xff]
        %v306 = vld [vmem:[%s3 + $0x48] sm:$0xff]
        %v307 = vld [vmem:[%s3 + $0x50] sm:$0xff]
        %v308 = vld [vmem:[%s3 + $0x58] sm:$0xff]
        %v309 = vld [vmem:[%s3 + $0x60] sm:$0xff]
        %v310 = vld [vmem:[%s3 + $0x68] sm:$0xff]
        %v311 = vld [vmem:[%s3 + $0x70] sm:$0xff]
        %v312 = vld [vmem:[%s3 + $0x78] sm:$0xff]
        %v313 = vmul.f32 %v293, %v295
        %v314 = vld [vmem:[%s4] sm:$0xff]
        %v315 = vld [vmem:[%s4 + $0x8] sm:$0xff]
        %v316 = vld [vmem:[%s4 + $0x10] sm:$0xff]
        %v317 = vld [vmem:[%s4 + $0x18] sm:$0xff]
        %v318 = vld [vmem:[%s4 + $0x20] sm:$0xff]
        %v319 = vld [vmem:[%s4 + $0x28] sm:$0xff]
        %v320 = vld [vmem:[%s4 + $0x30] sm:$0xff]
        %v321 = vld [vmem:[%s4 + $0x38] sm:$0xff]
        %v322 = vld [vmem:[%s4 + $0x40] sm:$0xff]
        %v323 = vld [vmem:[%s4 + $0x48] sm:$0xff]
        %v324 = vld [vmem:[%s4 + $0x50] sm:$0xff]
        %v325 = vld [vmem:[%s4 + $0x58] sm:$0xff]
        %v326 = vld [vmem:[%s4 + $0x60] sm:$0xff]
        %v327 = vld [vmem:[%s4 + $0x68] sm:$0xff]
        %v328 = vld [vmem:[%s4 + $0x70] sm:$0xff]
        %v329 = vld [vmem:[%s4 + $0x78] sm:$0xff]
        %330 = vmatprep.subr.mxu0 0.0
        %331 = vmatpush1.msra.mxu0 %v314
        %332 = vmatprep.subr.mxu0 0.0
        %333 = vmatpush1.msra.mxu0 %v315
        %334 = vmatprep.subr.mxu0 0.0
        %335 = vmatpush1.msra.mxu0 %v316
        %336 = vmatprep.subr.mxu0 0.0
        %337 = vmatpush1.msra.mxu0 %v317
        %338 = vmatprep.subr.mxu0 0.0
        %339 = vmatpush1.msra.mxu0 %v318
        %340 = vmatprep.subr.mxu0 0.0
        %341 = vmatpush1.msra.mxu0 %v319
        %342 = vmatprep.subr.mxu0 0.0
        %343 = vmatpush1.msra.mxu0 %v320
        %344 = vmatprep.subr.mxu0 0.0
        %345 = vmatpush1.msra.mxu0 %v321
        %346 = vmatprep.subr.mxu0 0.0
        %347 = vmatpush1.msra.mxu0 %v322
        %348 = vmatprep.subr.mxu0 0.0
        %349 = vmatpush1.msra.mxu0 %v323
        %350 = vmatprep.subr.mxu0 0.0
        %351 = vmatpush1.msra.mxu0 %v324
        %352 = vmatprep.subr.mxu0 0.0
        %353 = vmatpush1.msra.mxu0 %v325
        %354 = vmatprep.subr.mxu0 0.0
        %355 = vmatpush1.msra.mxu0 %v326
        %356 = vmatprep.subr.mxu0 0.0
        %357 = vmatpush1.msra.mxu0 %v327
        %358 = vmatprep.subr.mxu0 0.0
        %359 = vmatpush1.msra.mxu0 %v328
        %360 = vmatprep.subr.mxu0 0.0
        %361 = vmatpush1.msra.mxu0 %v329
        %362 = vmatprep.subr.mxu0 0.0
        %363 = vmatpush1.msra.mxu0 0.0
        %364 = vmatprep.subr.mxu0 0.0
        %365 = vmatpush1.msra.mxu0 0.0
        %366 = vmatprep.subr.mxu0 0.0
        %367 = vmatpush1.msra.mxu0 0.0
        %368 = vmatprep.subr.mxu0 0.0
        %369 = vmatpush1.msra.mxu0 0.0
        %370 = vmatprep.subr.mxu0 0.0
        %371 = vmatpush1.msra.mxu0 0.0
        %372 = vmatprep.subr.mxu0 0.0
        %373 = vmatpush1.msra.mxu0 0.0
        %374 = vmatprep.subr.mxu0 0.0
        %375 = vmatpush1.msra.mxu0 0.0
        %376 = vmatprep.subr.mxu0 0.0
        %377 = vmatpush1.msra.mxu0 0.0
        %378 = vmatprep.subr.mxu0 0.0
        %379 = vmatpush1.msra.mxu0 0.0
        %380 = vmatprep.subr.mxu0 0.0
        %381 = vmatpush1.msra.mxu0 0.0
        %382 = vmatprep.subr.mxu0 0.0
        %383 = vmatpush1.msra.mxu0 0.0
        %384 = vmatprep.subr.mxu0 0.0
        %385 = vmatpush1.msra.mxu0 0.0
        %386 = vmatprep.subr.mxu0 0.0
        %387 = vmatpush1.msra.mxu0 0.0
        %388 = vmatprep.subr.mxu0 0.0
        %389 = vmatpush1.msra.mxu0 0.0
        %390 = vmatprep.subr.mxu0 0.0
        %391 = vmatpush1.msra.mxu0 0.0
        %392 = vmatprep.subr.mxu0 0.0
        %393 = vmatpush1.msra.mxu0 0.0
        %394 = vmatprep.mubr.f32.mxu0 0.0
        %395 = vmatmul.mubr.f32.gmra.mrb[0].mxu0 %v313
        %v396 = vpop.f32.mrb[0].mxu0
        %v397 = vadd.f32 0.0, %v396
        %v398 = vpop.f32.mrb[0].mxu0
        %399 = vdwg.mxu0
        %400 = vmatprep.subr.mxu0 0.0
        %401 = vmatpush1.msra.mxu0 %v297
        %402 = vmatprep.subr.mxu0 0.0
        %403 = vmatpush1.msra.mxu0 %v298
        %404 = vmatprep.subr.mxu0 0.0
        %405 = vmatpush1.msra.mxu0 %v299
        %406 = vmatprep.subr.mxu0 0.0
        %407 = vmatpush1.msra.mxu0 %v300
        %408 = vmatprep.subr.mxu0 0.0
        %409 = vmatpush1.msra.mxu0 %v301
        %410 = vmatprep.subr.mxu0 0.0
        %411 = vmatpush1.msra.mxu0 %v302
        %412 = vmatprep.subr.mxu0 0.0
        %413 = vmatpush1.msra.mxu0 %v303
        %414 = vmatprep.subr.mxu0 0.0
        %415 = vmatpush1.msra.mxu0 %v304
        %416 = vmatprep.subr.mxu0 0.0
        %417 = vmatpush1.msra.mxu0 %v305
        %418 = vmatprep.subr.mxu0 0.0
        %419 = vmatpush1.msra.mxu0 %v306
        %420 = vmatprep.subr.mxu0 0.0
        %421 = vmatpush1.msra.mxu0 %v307
        %422 = vmatprep.subr.mxu0 0.0
        %423 = vmatpush1.msra.mxu0 %v308
        %424 = vmatprep.subr.mxu0 0.0
        %425 = vmatpush1.msra.mxu0 %v309
        %426 = vmatprep.subr.mxu0 0.0
        %427 = vmatpush1.msra.mxu0 %v310
        %428 = vmatprep.subr.mxu0 0.0
        %429 = vmatpush1.msra.mxu0 %v311
        %430 = vmatprep.subr.mxu0 0.0
        %431 = vmatpush1.msra.mxu0 %v312
        %432 = vmatprep.subr.mxu0 0.0
        %433 = vmatpush1.msra.mxu0 0.0
        %434 = vmatprep.subr.mxu0 0.0
        %435 = vmatpush1.msra.mxu0 0.0
        %436 = vmatprep.subr.mxu0 0.0
        %437 = vmatpush1.msra.mxu0 0.0
        %438 = vmatprep.subr.mxu0 0.0
        %439 = vmatpush1.msra.mxu0 0.0
        %440 = vmatprep.subr.mxu0 0.0
        %441 = vmatpush1.msra.mxu0 0.0
        %442 = vmatprep.subr.mxu0 0.0
        %443 = vmatpush1.msra.mxu0 0.0
        %444 = vmatprep.subr.mxu0 0.0
        %445 = vmatpush1.msra.mxu0 0.0
        %446 = vmatprep.subr.mxu0 0.0
        %447 = vmatpush1.msra.mxu0 0.0
        %448 = vmatprep.subr.mxu0 0.0
        %449 = vmatpush1.msra.mxu0 0.0
        %450 = vmatprep.subr.mxu0 0.0
        %451 = vmatpush1.msra.mxu0 0.0
        %452 = vmatprep.subr.mxu0 0.0
        %453 = vmatpush1.msra.mxu0 0.0
        %454 = vmatprep.subr.mxu0 0.0
        %455 = vmatpush1.msra.mxu0 0.0
        %456 = vmatprep.subr.mxu0 0.0
        %457 = vmatpush1.msra.mxu0 0.0
        %458 = vmatprep.subr.mxu0 0.0
        %459 = vmatpush1.msra.mxu0 0.0
        %460 = vmatprep.subr.mxu0 0.0
        %461 = vmatpush1.msra.mxu0 0.0
        %462 = vmatprep.subr.mxu0 0.0
        %463 = vmatpush1.msra.mxu0 0.0
        %464 = vmatprep.mubr.f32.mxu0 0.0
        %465 = vmatmul.mubr.f32.gmra.mrb[0].mxu0 %v296
        %v466 = vpop.f32.mrb[0].mxu0
        %v467 = vadd.f32 %v397, %v466
        %v468 = vpop.f32.mrb[0].mxu0
        %469 = vdwg.mxu0
        %v470 = vld [vmem:[#allocation2] sm:$0xff]
        %v471 = vmin.f32 %v467, 0.0
        %v472 = vand.u32 2147483647, %v467
        %v473 = vsub.f32 0.0, %v472
        %v474 = vmul.f32 %v473, 1.442695
        %v475 = vpow.pop %v474
        %v476 = vadd.f32 %v475, 1.0
        %v477 = vlog2.pop %v476
        %v478 = vmul.f32 %v477, 0.6931472
        %v479 = vmul.f32 -0.5, %v475
        %v480 = vadd.f32 %v479, 1.0
        %v481 = vmul.f32 %v480, %v475
        %v482 = vand.u32 2147483647, %v475
        %vm483 = vcmp.lt.f32.partialorder %v482, 0.0004427343
        %v484 = vsel %vm483, %v481, %v478
        %v485 = vsub.f32 %v471, %v484
        %v486 = vadd.f32 %v470, %v485
        %vm487 = vcmask 64512
        %488 = vst.msk [vmem:[#allocation2] sm:$0xff] %vm487, %v486
        // Predicated region
        $region45: #{tpu_custom_call.1} parent=39 // pred_check
          %p489 = pneg %p287
        $region46: #{tpu_custom_call.1} parent=39 // pred_check_branch
          %491 = sbr.rel (%p489) target = $region48
        $region47: #{tpu_custom_call.1} parent=39 // pred_region
          %v492 = vld [vmem:[#allocation2] sm:$0xff]
          %v493 = vsel %vm487, %v492, 0.0
          %494 = vadd.xlane.f32.xlu0 %v493
          %v495 = vpop.xlane.xlu0 %494
          %v496 = vrot.slane %v495, 4
          %v497 = vadd.f32 %v495, %v496
          %v498 = vrot.slane %v497, 2
          %v499 = vadd.f32 %v497, %v498
          %v500 = vrot.slane %v499, 1
          %v501 = vadd.f32 %v499, %v500
          %s502 = vtos %v501
          %v503 = vstv %s502
          %504 = vst [vmem:[%s268] sm:$0xff] %v503
        $region48: #{tpu_custom_call.1} parent=39 // pred_fallthru
          _
        %s505 = sand.u32 %s165, 1
        %s506 = scalar_lea.sflag [#allocation4], %s505
        %s507 = sand.u32 %s165, 1
        %s508 = smul.addr %s507, 8
        %s509 = scalar_lea.vmem [#allocation3], %s508
        // Predicated region
        $region49: #{tpu_custom_call.1} parent=39 // pred_check
          %p510 = pneg %p175
        $region50: #{tpu_custom_call.1} parent=39 // pred_check_branch
          %512 = sbr.rel (%p510) target = $region52
        $region51: #{tpu_custom_call.1} parent=39 // pred_region
          %s514 = ssub.s32 128, 128
          %515 = vsyncadd %s506, %s514
          %s516 = smul.addr %s23, 128
          %s517 = scalar_lea.hbm %s5, %s516
          %s519 = sshll.u32 %s509, 4
          %s520 = int_to_ptr.vmem [resolvable:$true] %s519
          %522 = dma.vmem_to_hbm [thread:$0]  %s520, 128, %s517, %s506
        $region52: #{tpu_custom_call.1} parent=39 // pred_fallthru
          _
      $region40: #{tpu_custom_call.1} parent=5 // pred_fallthru
        _
      %p523 = scmp.le.s32.totalorder 2, %s14
      // Predicated region
      $region53: #{tpu_custom_call.1} parent=5 // pred_check
        %p524 = pneg %p523
      $region54: #{tpu_custom_call.1} parent=5 // pred_check_branch
        %526 = sbr.rel (%p524) target = $region56
      $region55: #{tpu_custom_call.1} parent=5 // pred_region
        %s527 = ssub.s32 %s14, 2
        // Predicated region
        $region57: #{tpu_custom_call.1} parent=55 // pred_check
          %p528 = pneg %p181
        $region58: #{tpu_custom_call.1} parent=55 // pred_check_branch
          %530 = sbr.rel (%p528) target = $region60
        $region59: #{tpu_custom_call.1} parent=55 // pred_region
          %s531 = sand.u32 %s166, 1
          %s532 = scalar_lea.sflag [#allocation4], %s531
          %s533 = sand.u32 %s166, 1
          %s534 = smul.addr %s533, 8
          %s535 = scalar_lea.vmem [#allocation3], %s534
          %536 = dma.done %s532, 128
        $region60: #{tpu_custom_call.1} parent=55 // pred_fallthru
          _
      $region56: #{tpu_custom_call.1} parent=5 // pred_fallthru
        _
    $region6: #{tpu_custom_call.1} parent=1 // loop_footer
      %s18 = sadd.s32 1, %s14
    $region7: #{tpu_custom_call.1} parent=1 // loop_footer_branch
      %13 = sbr.rel target = $region3
    $region8: #{tpu_custom_call.1} parent=1 // loop_exit
      _
    %537 = vsyncpa [#allocation4], 1
    %s538 = scalar_lea.sflag [#allocation4], 1
    %539 = vsyncpa %s538, 1

</llo_original>
